<compile_context>
chip_gen: v7x
topology: tpu7x:2x2x1
jax: 0.10.0
libtpu: 0.0.40
codegen_flags: <defaults>
</compile_context>

<pallas_src>
import functools

import jax
import jax.numpy as jnp
from jax.experimental import pallas as pl
from jax.experimental.pallas import tpu as pltpu


def resblock_kernel(x_ref, w1_ref, b1_ref, w2_ref, b2_ref, o_ref, *, H, W):
    # x_ref:  (1, Cin, H*W)   activations, channels in sublanes, spatial in lanes
    # w1_ref: (Cmid, 9*Cin)   3x3 conv weights, columns ordered (dy, dx, cin)
    # b1_ref: (Cmid, 1)
    # w2_ref: (Cin, Cmid)     1x1 conv weights
    # b2_ref: (Cin, 1)
    # o_ref:  (1, Cin, H*W)
    Cin = x_ref.shape[1]
    HW = H * W

    x = x_ref[0]                       # (Cin, HW) f32 -- also the residual
    h = jnp.maximum(x, 0.0)            # first ReLU

    # Zero-extend the flattened spatial axis by W+1 on each side.  A shifted
    # window h[p + dy*W + dx] then becomes a plain static lane-slice of hext;
    # out-of-image *rows* land in the zero pads automatically, out-of-image
    # *columns* are killed by the two masks below.
    pad = W + 1
    zpad = jnp.zeros((Cin, pad), dtype=h.dtype)
    hext = jnp.concatenate([zpad, h, zpad], axis=1)        # (Cin, HW + 2W + 2)

    col = jax.lax.broadcasted_iota(jnp.int32, (1, HW), 1) % W
    left_ok = col >= 1                  # source column col-1 is inside the image
    right_ok = col <= (W - 2)           # source column col+1 is inside the image

    # im2col: stack the 9 shifted/masked copies of h along the sublane axis.
    slabs = []
    for dy in (-1, 0, 1):
        for dx in (-1, 0, 1):
            start = pad + dy * W + dx                      # static Python int
            s = hext[:, start:start + HW]                  # (Cin, HW)
            if dx == -1:
                s = jnp.where(left_ok, s, 0.0)
            elif dx == 1:
                s = jnp.where(right_ok, s, 0.0)
            slabs.append(s)
    patches = jnp.concatenate(slabs, axis=0)               # (9*Cin, HW)

    # 3x3 conv as a single fused matmul (lane-dense N dim = H*W), bias, ReLU.
    acc = jnp.dot(w1_ref[...], patches,
                  preferred_element_type=jnp.float32)      # (Cmid, HW)
    mid = jnp.maximum(acc + b1_ref[...], 0.0)

    # 1x1 conv (channel matmul), bias, residual add, writeback.
    out = jnp.dot(w2_ref[...], mid,
                  preferred_element_type=jnp.float32) + b2_ref[...]   # (Cin, HW)
    o_ref[0] = (out + x).astype(o_ref.dtype)


def resblock(x, w1, b1, w2, b2):
    """x: (N, Cin, H, W) f32.  w1: (Cmid, Cin, 3, 3), b1: (Cmid,),
    w2: (Cin, Cmid, 1, 1), b2: (Cin,)  -- PyTorch layouts."""
    N, Cin, H, W = x.shape
    Cmid = w1.shape[0]
    HW = H * W

    # Free, contiguous reshapes / tiny one-time weight rearrangement.
    x_flat = x.reshape(N, Cin, HW)
    w1f = jnp.transpose(w1, (0, 2, 3, 1)).reshape(Cmid, 9 * Cin)  # cols = (dy,dx,cin)
    w2f = w2.reshape(Cin, Cmid)
    b1c = b1.reshape(Cmid, 1)
    b2c = b2.reshape(Cin, 1)

    kernel = functools.partial(resblock_kernel, H=H, W=W)

    out_flat = pl.pallas_call(
        kernel,
        out_shape=jax.ShapeDtypeStruct((N, Cin, HW), x.dtype),
        grid_spec=pltpu.PrefetchScalarGridSpec(
            num_scalar_prefetch=0,
            grid=(N,),
            in_specs=[
                pl.BlockSpec((1, Cin, HW), lambda n: (n, 0, 0)),
                pl.BlockSpec((Cmid, 9 * Cin), lambda n: (0, 0)),
                pl.BlockSpec((Cmid, 1), lambda n: (0, 0)),
                pl.BlockSpec((Cin, Cmid), lambda n: (0, 0)),
                pl.BlockSpec((Cin, 1), lambda n: (0, 0)),
            ],
            out_specs=pl.BlockSpec((1, Cin, HW), lambda n: (n, 0, 0)),
        ),
        # Per-step VMEM use here is only a few tens of KB, well under every
        # generation's default scoped limit, so vmem_limit_bytes is left alone;
        # raise it (and add H-tiling with a 1-row halo) for production C/H/W.
        compiler_params=pltpu.CompilerParams(
            dimension_semantics=("parallel",)),
    )(x_flat, w1f, b1c, w2f, b2c)

    return out_flat.reshape(N, Cin, H, W)


def resblock_ref(x, w1, b1, w2, b2):
    """Pure-JAX reference matching the PyTorch module (NCHW / OIHW)."""
    h = jnp.maximum(x, 0.0)
    y = jax.lax.conv_general_dilated(
        h, w1, window_strides=(1, 1), padding="SAME",
        dimension_numbers=("NCHW", "OIHW", "NCHW"),
        precision=jax.lax.Precision.HIGHEST) + b1[None, :, None, None]
    y = jnp.maximum(y, 0.0)
    z = jax.lax.conv_general_dilated(
        y, w2, window_strides=(1, 1), padding="SAME",
        dimension_numbers=("NCHW", "OIHW", "NCHW"),
        precision=jax.lax.Precision.HIGHEST) + b2[None, :, None, None]
    return z + x


if __name__ == "__main__":
    # Small shapes consistent with ResBlock(in_channel=4, out_channels=8).
    N, H, W = 2, 16, 16
    Cin, Cmid = 4, 8

    key = jax.random.PRNGKey(0)
    kx, kw1, kb1, kw2, kb2 = jax.random.split(key, 5)

    x = jax.random.normal(kx, (N, Cin, H, W), dtype=jnp.float32)
    w1 = jax.random.normal(kw1, (Cmid, Cin, 3, 3), dtype=jnp.float32) * 0.1
    b1 = jax.random.normal(kb1, (Cmid,), dtype=jnp.float32) * 0.1
    w2 = jax.random.normal(kw2, (Cin, Cmid, 1, 1), dtype=jnp.float32) * 0.1
    b2 = jax.random.normal(kb2, (Cin,), dtype=jnp.float32) * 0.1

    out = resblock(x, w1, b1, w2, b2)
    out = jax.block_until_ready(out)

    ref = resblock_ref(x, w1, b1, w2, b2)
    assert out.shape == (N, Cin, H, W)
    assert jnp.allclose(out, ref, atol=1e-3, rtol=1e-3), "mismatch vs. reference"

    print("KERNEL_OK")
</pallas_src>

<mosaic_0001>
module attributes {stable_mosaic.version = 11 : i64} {
  func.func @resblock_kernel(%arg0: i32, %arg1: memref<1x4x256xf32, #tpu.memory_space<vmem>>, %arg2: memref<8x36xf32, #tpu.memory_space<vmem>>, %arg3: memref<8x1xf32, #tpu.memory_space<vmem>>, %arg4: memref<4x8xf32, #tpu.memory_space<vmem>>, %arg5: memref<4x1xf32, #tpu.memory_space<vmem>>, %arg6: memref<1x4x256xf32, #tpu.memory_space<vmem>>) attributes {dimension_semantics = [#tpu.dimension_semantics<parallel>], iteration_bounds = array<i64: 2>, scalar_prefetch = 0 : i64, scratch_operands = 0 : i64, tpu.core_type = #tpu.core_type<tc>, window_params = [{transform_indices = @transform_0, window_bounds = array<i64: 1, 4, 256>}, {pipeline_mode = #tpu.pipeline_mode<synchronous>, transform_indices = @transform_1, window_bounds = array<i64: 8, 36>}, {pipeline_mode = #tpu.pipeline_mode<synchronous>, transform_indices = @transform_2, window_bounds = array<i64: 8, 1>}, {pipeline_mode = #tpu.pipeline_mode<synchronous>, transform_indices = @transform_3, window_bounds = array<i64: 4, 8>}, {pipeline_mode = #tpu.pipeline_mode<synchronous>, transform_indices = @transform_4, window_bounds = array<i64: 4, 1>}, {transform_indices = @transform_5, window_bounds = array<i64: 1, 4, 256>}]} {
    %c0 = arith.constant 0 : index
    %c0_0 = arith.constant 0 : index
    %c0_1 = arith.constant 0 : index
    %0 = vector.load %arg1[%c0, %c0_0, %c0_1] : memref<1x4x256xf32, #tpu.memory_space<vmem>>, vector<1x4x256xf32>
    %1 = vector.shape_cast %0 : vector<1x4x256xf32> to vector<4x256xf32>
    %cst = arith.constant 0.000000e+00 : f32
    %2 = vector.broadcast %cst : f32 to vector<4x256xf32>
    %3 = arith.maximumf %1, %2 : vector<4x256xf32>
    %cst_2 = arith.constant 0.000000e+00 : f32
    %4 = vector.broadcast %cst_2 : f32 to vector<4x17xf32>
    %5 = tpu.concatenate %4, %3, %4 in 1 : vector<4x17xf32>, vector<4x256xf32>, vector<4x17xf32> -> vector<4x290xf32>
    %6 = tpu.iota {dimensions = array<i32: 1>} : vector<1x256xi32>
    %c16_i32 = arith.constant 16 : i32
    %c0_i32 = arith.constant 0 : i32
    %7 = arith.cmpi eq, %c16_i32, %c0_i32 : i32
    %c1_i32 = arith.constant 1 : i32
    %8 = arith.select %7, %c1_i32, %c16_i32 : i32
    %9 = vector.broadcast %8 : i32 to vector<1x256xi32>
    %10 = arith.remsi %6, %9 : vector<1x256xi32>
    %c0_i32_3 = arith.constant 0 : i32
    %11 = vector.broadcast %c0_i32_3 : i32 to vector<1x256xi32>
    %12 = arith.cmpi ne, %10, %11 : vector<1x256xi32>
    %c0_i32_4 = arith.constant 0 : i32
    %13 = vector.broadcast %c0_i32_4 : i32 to vector<1x256xi32>
    %14 = arith.cmpi slt, %10, %13 : vector<1x256xi32>
    %c0_i32_5 = arith.constant 0 : i32
    %15 = arith.cmpi slt, %8, %c0_i32_5 : i32
    %16 = vector.broadcast %15 : i1 to vector<1x256xi1>
    %17 = vector.broadcast %16 : vector<1x256xi1> to vector<1x256xi1>
    %18 = arith.xori %14, %17 : vector<1x256xi1>
    %19 = arith.andi %18, %12 : vector<1x256xi1>
    %20 = vector.broadcast %8 : i32 to vector<1x256xi32>
    %21 = arith.addi %10, %20 : vector<1x256xi32>
    %22 = arith.select %19, %21, %10 : vector<1x256xi1>, vector<1x256xi32>
    %c1_i32_6 = arith.constant 1 : i32
    %23 = vector.broadcast %c1_i32_6 : i32 to vector<1x256xi32>
    %24 = arith.cmpi sge, %22, %23 : vector<1x256xi32>
    %c14_i32 = arith.constant 14 : i32
    %25 = vector.broadcast %c14_i32 : i32 to vector<1x256xi32>
    %26 = arith.cmpi sle, %22, %25 : vector<1x256xi32>
    %27 = vector.extract_strided_slice %5 {offsets = [0, 0], sizes = [4, 256], strides = [1, 1]} : vector<4x290xf32> to vector<4x256xf32>
    %cst_7 = arith.constant 0.000000e+00 : f32
    %28 = vector.shape_cast %24 : vector<1x256xi1> to vector<1x256xi1>
    %29 = vector.broadcast %28 : vector<1x256xi1> to vector<4x256xi1>
    %30 = vector.broadcast %cst_7 : f32 to vector<4x256xf32>
    %31 = arith.select %29, %27, %30 : vector<4x256xi1>, vector<4x256xf32>
    %32 = vector.extract_strided_slice %5 {offsets = [0, 1], sizes = [4, 256], strides = [1, 1]} : vector<4x290xf32> to vector<4x256xf32>
    %33 = vector.extract_strided_slice %5 {offsets = [0, 2], sizes = [4, 256], strides = [1, 1]} : vector<4x290xf32> to vector<4x256xf32>
    %cst_8 = arith.constant 0.000000e+00 : f32
    %34 = vector.shape_cast %26 : vector<1x256xi1> to vector<1x256xi1>
    %35 = vector.broadcast %34 : vector<1x256xi1> to vector<4x256xi1>
    %36 = vector.broadcast %cst_8 : f32 to vector<4x256xf32>
    %37 = arith.select %35, %33, %36 : vector<4x256xi1>, vector<4x256xf32>
    %38 = vector.extract_strided_slice %5 {offsets = [0, 16], sizes = [4, 256], strides = [1, 1]} : vector<4x290xf32> to vector<4x256xf32>
    %cst_9 = arith.constant 0.000000e+00 : f32
    %39 = vector.shape_cast %24 : vector<1x256xi1> to vector<1x256xi1>
    %40 = vector.broadcast %39 : vector<1x256xi1> to vector<4x256xi1>
    %41 = vector.broadcast %cst_9 : f32 to vector<4x256xf32>
    %42 = arith.select %40, %38, %41 : vector<4x256xi1>, vector<4x256xf32>
    %43 = vector.extract_strided_slice %5 {offsets = [0, 17], sizes = [4, 256], strides = [1, 1]} : vector<4x290xf32> to vector<4x256xf32>
    %44 = vector.extract_strided_slice %5 {offsets = [0, 18], sizes = [4, 256], strides = [1, 1]} : vector<4x290xf32> to vector<4x256xf32>
    %cst_10 = arith.constant 0.000000e+00 : f32
    %45 = vector.shape_cast %26 : vector<1x256xi1> to vector<1x256xi1>
    %46 = vector.broadcast %45 : vector<1x256xi1> to vector<4x256xi1>
    %47 = vector.broadcast %cst_10 : f32 to vector<4x256xf32>
    %48 = arith.select %46, %44, %47 : vector<4x256xi1>, vector<4x256xf32>
    %49 = vector.extract_strided_slice %5 {offsets = [0, 32], sizes = [4, 256], strides = [1, 1]} : vector<4x290xf32> to vector<4x256xf32>
    %cst_11 = arith.constant 0.000000e+00 : f32
    %50 = vector.shape_cast %24 : vector<1x256xi1> to vector<1x256xi1>
    %51 = vector.broadcast %50 : vector<1x256xi1> to vector<4x256xi1>
    %52 = vector.broadcast %cst_11 : f32 to vector<4x256xf32>
    %53 = arith.select %51, %49, %52 : vector<4x256xi1>, vector<4x256xf32>
    %54 = vector.extract_strided_slice %5 {offsets = [0, 33], sizes = [4, 256], strides = [1, 1]} : vector<4x290xf32> to vector<4x256xf32>
    %55 = vector.extract_strided_slice %5 {offsets = [0, 34], sizes = [4, 256], strides = [1, 1]} : vector<4x290xf32> to vector<4x256xf32>
    %cst_12 = arith.constant 0.000000e+00 : f32
    %56 = vector.shape_cast %26 : vector<1x256xi1> to vector<1x256xi1>
    %57 = vector.broadcast %56 : vector<1x256xi1> to vector<4x256xi1>
    %58 = vector.broadcast %cst_12 : f32 to vector<4x256xf32>
    %59 = arith.select %57, %55, %58 : vector<4x256xi1>, vector<4x256xf32>
    %60 = tpu.concatenate %31, %32, %37, %42, %43, %48, %53, %54, %59 in 0 : vector<4x256xf32>, vector<4x256xf32>, vector<4x256xf32>, vector<4x256xf32>, vector<4x256xf32>, vector<4x256xf32>, vector<4x256xf32>, vector<4x256xf32>, vector<4x256xf32> -> vector<36x256xf32>
    %c0_13 = arith.constant 0 : index
    %c0_14 = arith.constant 0 : index
    %61 = vector.load %arg2[%c0_13, %c0_14] : memref<8x36xf32, #tpu.memory_space<vmem>>, vector<8x36xf32>
    %cst_15 = arith.constant dense<0.000000e+00> : vector<8x256xf32>
    %62 = tpu.matmul %61, %60, %cst_15 {dimension_numbers = #tpu.dot_dimension_numbers<[1], [0], [0], [1], [0, 0, 1, 1], [], []>} : vector<8x36xf32>, vector<36x256xf32>, vector<8x256xf32> -> vector<8x256xf32>
    %c0_16 = arith.constant 0 : index
    %c0_17 = arith.constant 0 : index
    %63 = vector.load %arg3[%c0_16, %c0_17] : memref<8x1xf32, #tpu.memory_space<vmem>>, vector<8x1xf32>
    %64 = vector.broadcast %63 : vector<8x1xf32> to vector<8x256xf32>
    %65 = arith.addf %62, %64 : vector<8x256xf32>
    %cst_18 = arith.constant 0.000000e+00 : f32
    %66 = vector.broadcast %cst_18 : f32 to vector<8x256xf32>
    %67 = arith.maximumf %65, %66 : vector<8x256xf32>
    %c0_19 = arith.constant 0 : index
    %c0_20 = arith.constant 0 : index
    %68 = vector.load %arg4[%c0_19, %c0_20] : memref<4x8xf32, #tpu.memory_space<vmem>>, vector<4x8xf32>
    %cst_21 = arith.constant dense<0.000000e+00> : vector<4x256xf32>
    %69 = tpu.matmul %68, %67, %cst_21 {dimension_numbers = #tpu.dot_dimension_numbers<[1], [0], [0], [1], [0, 0, 1, 1], [], []>} : vector<4x8xf32>, vector<8x256xf32>, vector<4x256xf32> -> vector<4x256xf32>
    %c0_22 = arith.constant 0 : index
    %c0_23 = arith.constant 0 : index
    %70 = vector.load %arg5[%c0_22, %c0_23] : memref<4x1xf32, #tpu.memory_space<vmem>>, vector<4x1xf32>
    %71 = vector.broadcast %70 : vector<4x1xf32> to vector<4x256xf32>
    %72 = arith.addf %69, %71 : vector<4x256xf32>
    %73 = arith.addf %72, %1 : vector<4x256xf32>
    %c0_24 = arith.constant 0 : index
    %c0_25 = arith.constant 0 : index
    %c0_26 = arith.constant 0 : index
    %74 = vector.load %arg6[%c0_24, %c0_25, %c0_26] : memref<1x4x256xf32, #tpu.memory_space<vmem>>, vector<1x4x256xf32>
    %75 = vector.shape_cast %74 : vector<1x4x256xf32> to vector<4x256xf32>
    %76 = vector.shape_cast %73 : vector<4x256xf32> to vector<1x4x256xf32>
    tpu.vector_store %arg6[%c0_24, %c0_25, %c0_26], %76 {strides = array<i32>} : memref<1x4x256xf32, #tpu.memory_space<vmem>>, vector<1x4x256xf32>,
    return
  }
  func.func @transform_0(%arg0: i32) -> (i32, i32, i32) {
    %c0_i32 = arith.constant 0 : i32
    %c0_i32_0 = arith.constant 0 : i32
    %c0_i32_1 = arith.constant 0 : i32
    return %arg0, %c0_i32, %c0_i32_0 : i32, i32, i32
  }
  func.func @transform_1(%arg0: i32) -> (i32, i32) {
    %c0_i32 = arith.constant 0 : i32
    %c0_i32_0 = arith.constant 0 : i32
    %c0_i32_1 = arith.constant 0 : i32
    return %c0_i32, %c0_i32_0 : i32, i32
  }
  func.func @transform_2(%arg0: i32) -> (i32, i32) {
    %c0_i32 = arith.constant 0 : i32
    %c0_i32_0 = arith.constant 0 : i32
    %c0_i32_1 = arith.constant 0 : i32
    return %c0_i32, %c0_i32_0 : i32, i32
  }
  func.func @transform_3(%arg0: i32) -> (i32, i32) {
    %c0_i32 = arith.constant 0 : i32
    %c0_i32_0 = arith.constant 0 : i32
    %c0_i32_1 = arith.constant 0 : i32
    return %c0_i32, %c0_i32_0 : i32, i32
  }
  func.func @transform_4(%arg0: i32) -> (i32, i32) {
    %c0_i32 = arith.constant 0 : i32
    %c0_i32_0 = arith.constant 0 : i32
    %c0_i32_1 = arith.constant 0 : i32
    return %c0_i32, %c0_i32_0 : i32, i32
  }
  func.func @transform_5(%arg0: i32) -> (i32, i32, i32) {
    %c0_i32 = arith.constant 0 : i32
    %c0_i32_0 = arith.constant 0 : i32
    %c0_i32_1 = arith.constant 0 : i32
    return %arg0, %c0_i32, %c0_i32_0 : i32, i32, i32
  }
}

</mosaic_0001>

<llo_original>
// kernel: tpu_custom_call.1
$region0: #{tpu_custom_call.1}
  #allocation0 [shape = 'u32[]', space=smem, size = 0x4, offset = 0x4, fixed_abs, tag = 'smem constant byte address 0x4 - core index']
  #allocation1 [shape = 'u32[144,128]{1,0:T(1,128)}', space=vmem, size = 0x12000, scoped, tag = 'internal scratch']
  %s0 = inlined_call_operand.hbm [shape: f32[2,4,256], index: 0, kind: input, shape index: {}]
  %s1 = inlined_call_operand.vmem [shape: f32[8,36], index: 1, kind: input, shape index: {}]
  %s2 = inlined_call_operand.vmem [shape: f32[8,1], index: 2, kind: input, shape index: {}]
  %s3 = inlined_call_operand.vmem [shape: f32[4,8], index: 3, kind: input, shape index: {}]
  %s4 = inlined_call_operand.vmem [shape: f32[4,1], index: 4, kind: input, shape index: {}]
  %s5 = inlined_call_operand.hbm [shape: f32[2,4,256], index: 5, kind: output, shape index: {}]
  %s6 = sld [smem:[#allocation0]]
  $region57: #{tpu_custom_call.1} parent=0
    _
  %s8 = ssub.s32 1, %s6
  %s9 = scalar_select 0, %s8, %s6
  $region1: #{tpu_custom_call.1} parent=0
    #allocation2 [shape = 'u8[8192]{0}', space=vmem, size = 0x2000, scoped, tag = 'input window, operand 0']
    #allocation3 [shape = 's32[2]{0}', space=sflag, size = 0x8, scoped, tag = 'scoped memory for tpu_custom_call.1']
    #allocation4 [shape = 's32[2]{0}', space=sflag, size = 0x8, scoped, tag = 'scoped memory for tpu_custom_call.1']
    #allocation5 [shape = 'u8[8192]{0}', space=vmem, size = 0x2000, scoped, tag = 'output window, operand 0']
    %10 = vsyncpa [#allocation3], 0
    %s11 = scalar_lea.sflag [#allocation3], 1
    %12 = vsyncpa %s11, 0
    %13 = vsyncpa [#allocation4], 0
    %s14 = scalar_lea.sflag [#allocation4], 1
    %15 = vsyncpa %s14, 0
    loop: start=0, step=1, limit=4
    $region2: #{tpu_custom_call.1} parent=1 // loop_pre_header
      _
    $region3: #{tpu_custom_call.1} parent=1 // loop_header
      %s17 = sphi 0, %s21
      %p18 = scmp.ge.s32.totalorder %s17, 4
      %s27 = sphi 0, %s29
      %s30 = sphi 0, %s27
      %s31 = sphi 0, %s30
      %s47 = sphi 0, %s31
      %s51 = sphi 0, %s51
      %s53 = sphi 0, %s51
      %s54 = sphi 0, %s53
      %s68 = sphi 0, %s54
      %s72 = sphi 0, %s72
      %s74 = sphi 0, %s72
      %s75 = sphi 0, %s74
      %s89 = sphi 0, %s75
      %s93 = sphi 0, %s93
      %s95 = sphi 0, %s93
      %s96 = sphi 0, %s95
      %s110 = sphi 0, %s96
      %s114 = sphi 0, %s114
      %s116 = sphi 0, %s114
      %s117 = sphi 0, %s116
      %s131 = sphi 0, %s117
      %s137 = sphi 0, %s139
      %s140 = sphi 0, %s137
      %s141 = sphi 0, %s140
      %s157 = sphi 0, %s141
    $region4: #{tpu_custom_call.1} parent=1 // loop_header_branch
      %20 = sbr.rel (%p18) target = $region8
    $region5: #{tpu_custom_call.1} parent=1 // loop_body
      %s22 = ssub.s32 %s17, 1
      %s23 = ssub.s32 %s17, 2
      %s24 = sadd.s32 %s17, 1
      %s25 = ssub.s32 %s17, %s24
      %p26 = scmp.eq.s32.totalorder %s25, 0
      %s28 = sadd.s32 %s27, 1
      %s29 = scalar_select %p26, %s27, %s28
      %p32 = pneg %p26
      %p33 = scmp.eq.s32.totalorder %s17, 1
      %p34 = por %p32, %p33
      %p35 = scmp.ne.s32.totalorder %s27, %s30
      %p36 = scmp.eq.s32.totalorder %s17, 0
      %p37 = por %p35, %p36
      %p38 = scmp.ne.s32.totalorder %s27, %s30
      %p39 = scmp.eq.s32.totalorder %s22, 1
      %p40 = por %p38, %p39
      %p41 = scmp.ne.s32.totalorder %s30, %s31
      %p42 = scmp.eq.s32.totalorder %s22, 0
      %p43 = por %p41, %p42
      %p44 = scmp.ne.s32.totalorder %s30, %s31
      %p45 = scmp.eq.s32.totalorder %s23, 1
      %p46 = por %p44, %p45
      %p48 = scmp.ne.s32.totalorder %s31, %s47
      %p49 = scmp.eq.s32.totalorder %s23, 0
      %p50 = por %p48, %p49
      %s52 = sadd.s32 %s51, 1
      %p55 = scmp.eq.s32.totalorder %s17, 1
      %p56 = scmp.ne.s32.totalorder %s51, %s53
      %p57 = scmp.eq.s32.totalorder %s17, 0
      %p58 = por %p56, %p57
      %p59 = scmp.ne.s32.totalorder %s51, %s53
      %p60 = scmp.eq.s32.totalorder %s22, 1
      %p61 = por %p59, %p60
      %p62 = scmp.ne.s32.totalorder %s53, %s54
      %p63 = scmp.eq.s32.totalorder %s22, 0
      %p64 = por %p62, %p63
      %p65 = scmp.ne.s32.totalorder %s53, %s54
      %p66 = scmp.eq.s32.totalorder %s23, 1
      %p67 = por %p65, %p66
      %p69 = scmp.ne.s32.totalorder %s54, %s68
      %p70 = scmp.eq.s32.totalorder %s23, 0
      %p71 = por %p69, %p70
      %s73 = sadd.s32 %s72, 1
      %p76 = scmp.eq.s32.totalorder %s17, 1
      %p77 = scmp.ne.s32.totalorder %s72, %s74
      %p78 = scmp.eq.s32.totalorder %s17, 0
      %p79 = por %p77, %p78
      %p80 = scmp.ne.s32.totalorder %s72, %s74
      %p81 = scmp.eq.s32.totalorder %s22, 1
      %p82 = por %p80, %p81
      %p83 = scmp.ne.s32.totalorder %s74, %s75
      %p84 = scmp.eq.s32.totalorder %s22, 0
      %p85 = por %p83, %p84
      %p86 = scmp.ne.s32.totalorder %s74, %s75
      %p87 = scmp.eq.s32.totalorder %s23, 1
      %p88 = por %p86, %p87
      %p90 = scmp.ne.s32.totalorder %s75, %s89
      %p91 = scmp.eq.s32.totalorder %s23, 0
      %p92 = por %p90, %p91
      %s94 = sadd.s32 %s93, 1
      %p97 = scmp.eq.s32.totalorder %s17, 1
      %p98 = scmp.ne.s32.totalorder %s93, %s95
      %p99 = scmp.eq.s32.totalorder %s17, 0
      %p100 = por %p98, %p99
      %p101 = scmp.ne.s32.totalorder %s93, %s95
      %p102 = scmp.eq.s32.totalorder %s22, 1
      %p103 = por %p101, %p102
      %p104 = scmp.ne.s32.totalorder %s95, %s96
      %p105 = scmp.eq.s32.totalorder %s22, 0
      %p106 = por %p104, %p105
      %p107 = scmp.ne.s32.totalorder %s95, %s96
      %p108 = scmp.eq.s32.totalorder %s23, 1
      %p109 = por %p107, %p108
      %p111 = scmp.ne.s32.totalorder %s96, %s110
      %p112 = scmp.eq.s32.totalorder %s23, 0
      %p113 = por %p111, %p112
      %s115 = sadd.s32 %s114, 1
      %p118 = scmp.eq.s32.totalorder %s17, 1
      %p119 = scmp.ne.s32.totalorder %s114, %s116
      %p120 = scmp.eq.s32.totalorder %s17, 0
      %p121 = por %p119, %p120
      %p122 = scmp.ne.s32.totalorder %s114, %s116
      %p123 = scmp.eq.s32.totalorder %s22, 1
      %p124 = por %p122, %p123
      %p125 = scmp.ne.s32.totalorder %s116, %s117
      %p126 = scmp.eq.s32.totalorder %s22, 0
      %p127 = por %p125, %p126
      %p128 = scmp.ne.s32.totalorder %s116, %s117
      %p129 = scmp.eq.s32.totalorder %s23, 1
      %p130 = por %p128, %p129
      %p132 = scmp.ne.s32.totalorder %s117, %s131
      %p133 = scmp.eq.s32.totalorder %s23, 0
      %p134 = por %p132, %p133
      %s135 = ssub.s32 %s17, %s24
      %p136 = scmp.eq.s32.totalorder %s135, 0
      %s138 = sadd.s32 %s137, 1
      %s139 = scalar_select %p136, %s137, %s138
      %p142 = pneg %p136
      %p143 = scmp.eq.s32.totalorder %s17, 1
      %p144 = por %p142, %p143
      %p145 = scmp.ne.s32.totalorder %s137, %s140
      %p146 = scmp.eq.s32.totalorder %s17, 0
      %p147 = por %p145, %p146
      %p148 = scmp.ne.s32.totalorder %s137, %s140
      %p149 = scmp.eq.s32.totalorder %s22, 1
      %p150 = por %p148, %p149
      %p151 = scmp.ne.s32.totalorder %s140, %s141
      %p152 = scmp.eq.s32.totalorder %s22, 0
      %p153 = por %p151, %p152
      %p154 = scmp.ne.s32.totalorder %s140, %s141
      %p155 = scmp.eq.s32.totalorder %s23, 1
      %p156 = por %p154, %p155
      %p158 = scmp.ne.s32.totalorder %s141, %s157
      %p159 = scmp.eq.s32.totalorder %s23, 0
      %p160 = por %p158, %p159
      %p161 = scmp.le.s32.totalorder 1, %s17
      %p162 = scmp.lt.s32.totalorder %s17, 3
      %p163 = pnand %p161, %p162
      %p164 = pneg %p163
      // Predicated region
      $region9: #{tpu_custom_call.1} parent=5 // pred_check
        _
      $region10: #{tpu_custom_call.1} parent=5 // pred_check_branch
        %166 = sbr.rel (%p163) target = $region12
      $region11: #{tpu_custom_call.1} parent=5 // pred_region
        %s167 = ssub.s32 %s17, 1
        // Predicated region
        $region13: #{tpu_custom_call.1} parent=11 // pred_check
          %p168 = pneg %p64
        $region14: #{tpu_custom_call.1} parent=11 // pred_check_branch
          %170 = sbr.rel (%p168) target = $region16
        $region15: #{tpu_custom_call.1} parent=11 // pred_region
          _
        $region16: #{tpu_custom_call.1} parent=11 // pred_fallthru
          _
        // Predicated region
        $region17: #{tpu_custom_call.1} parent=11 // pred_check
          %p171 = pneg %p85
        $region18: #{tpu_custom_call.1} parent=11 // pred_check_branch
          %173 = sbr.rel (%p171) target = $region20
        $region19: #{tpu_custom_call.1} parent=11 // pred_region
          _
        $region20: #{tpu_custom_call.1} parent=11 // pred_fallthru
          _
        // Predicated region
        $region21: #{tpu_custom_call.1} parent=11 // pred_check
          %p174 = pneg %p106
        $region22: #{tpu_custom_call.1} parent=11 // pred_check_branch
          %176 = sbr.rel (%p174) target = $region24
        $region23: #{tpu_custom_call.1} parent=11 // pred_region
          _
        $region24: #{tpu_custom_call.1} parent=11 // pred_fallthru
          _
        // Predicated region
        $region25: #{tpu_custom_call.1} parent=11 // pred_check
          %p177 = pneg %p127
        $region26: #{tpu_custom_call.1} parent=11 // pred_check_branch
          %179 = sbr.rel (%p177) target = $region28
        $region27: #{tpu_custom_call.1} parent=11 // pred_region
          _
        $region28: #{tpu_custom_call.1} parent=11 // pred_fallthru
          _
      $region12: #{tpu_custom_call.1} parent=5 // pred_fallthru
        _
      %p180 = scmp.lt.s32.totalorder %s17, 2
      // Predicated region
      $region29: #{tpu_custom_call.1} parent=5 // pred_check
        %p181 = pneg %p180
      $region30: #{tpu_custom_call.1} parent=5 // pred_check_branch
        %183 = sbr.rel (%p181) target = $region32
      $region31: #{tpu_custom_call.1} parent=5 // pred_region
        // Predicated region
        $region33: #{tpu_custom_call.1} parent=31 // pred_check
          %p184 = pneg %p37
        $region34: #{tpu_custom_call.1} parent=31 // pred_check_branch
          %186 = sbr.rel (%p184) target = $region36
        $region35: #{tpu_custom_call.1} parent=31 // pred_region
          %s187 = sand.u32 %s27, 1
          %s188 = scalar_lea.sflag [#allocation3], %s187
          %s189 = sand.u32 %s27, 1
          %s190 = smul.addr %s189, 8
          %s191 = scalar_lea.vmem [#allocation2], %s190
          %s193 = ssub.s32 128, 128
          %194 = vsyncadd %s188, %s193
          %s195 = smul.addr %s17, 2
          %s196 = smul.addr %s195, 64
          %s197 = scalar_lea.hbm %s0, %s196
          %s199 = sshll.u32 %s191, 4
          %s200 = int_to_ptr.vmem [resolvable:$true] %s199
          %202 = dma.hbm_to_vmem [thread:$0]  %s197, 128, %s200, %s188
        $region36: #{tpu_custom_call.1} parent=31 // pred_fallthru
          _
      $region32: #{tpu_custom_call.1} parent=5 // pred_fallthru
        _
      %p203 = scmp.le.s32.totalorder 1, %s17
      %p204 = scmp.lt.s32.totalorder %s17, 3
      %p205 = pnand %p203, %p204
      %p206 = pneg %p205
      // Predicated region
      $region37: #{tpu_custom_call.1} parent=5 // pred_check
        _
      $region38: #{tpu_custom_call.1} parent=5 // pred_check_branch
        %208 = sbr.rel (%p205) target = $region40
      $region39: #{tpu_custom_call.1} parent=5 // pred_region
        %s209 = ssub.s32 %s17, 1
        %s210 = sand.u32 %s30, 1
        %s211 = scalar_lea.sflag [#allocation3], %s210
        %s212 = sand.u32 %s30, 1
        %s213 = smul.addr %s212, 8
        %s214 = scalar_lea.vmem [#allocation2], %s213
        // Predicated region
        $region41: #{tpu_custom_call.1} parent=39 // pred_check
          %p215 = pneg %p43
        $region42: #{tpu_custom_call.1} parent=39 // pred_check_branch
          %217 = sbr.rel (%p215) target = $region44
        $region43: #{tpu_custom_call.1} parent=39 // pred_region
          %218 = dma.done %s211, 128
        $region44: #{tpu_custom_call.1} parent=39 // pred_fallthru
          _
        %s219 = sand.u32 %s30, 1
        %s220 = scalar_lea.sflag [#allocation3], %s219
        %s221 = sand.u32 %s30, 1
        %s222 = smul.addr %s221, 8
        %s223 = scalar_lea.vmem [#allocation2], %s222
        %p224 = pneg %p43
        %p225 = pneg %p40
        %p226 = pneg %p64
        %p227 = pneg %p61
        %p228 = pneg %p85
        %p229 = pneg %p82
        %p230 = pneg %p106
        %p231 = pneg %p103
        %p232 = pneg %p127
        %p233 = pneg %p124
        %p234 = pneg %p153
        %p235 = pneg %p150
        %s236 = sand.u32 %s140, 1
        %s237 = scalar_lea.sflag [#allocation4], %s236
        %s238 = sand.u32 %s140, 1
        %s239 = smul.addr %s238, 8
        %s240 = scalar_lea.vmem [#allocation5], %s239
        %v241 = vld [vmem:[%s214] sm:$0xff]
        %v242 = vmax.f32 %v241, 0.0
        %v244 = vcombine.high %v242, %v242
        %245 = vrot.lane.b32.xlu0 %v242, 17
        %v246 = vpop.permute.xlu0 %245
        %247 = vrot.lane.b32.xlu0 %v244, 17
        %v248 = vpop.permute.xlu0 %247
        %vm249 = vcmask 138240
        %v250 = vsel %vm249, %v246, %v248
        %v254 = vsel %vm249, 0.0, %v246
        %v255 = vsel %vm249, %v248, 0.0
        %v256 = vlaneseq
        %v257 = vand.u32 %v256, 127
        %v258 = vadd.s32 %v257, 128
        %vm259 = vcmp.lt.s32.totalorder %v257, 0
        %v260 = vsub.s32 0, %v257
        %v261 = vsel %vm259, %v260, %v257
        %v262 = vshrl.u32 %v261, 4
        %v263 = vand.u32 %v261, 15
        %v264 = vsub.s32 0, %v263
        %v265 = vsel %vm259, %v264, %v263
        %vm266 = vcmp.lt.s32.totalorder %v258, 0
        %v267 = vsub.s32 0, %v258
        %v268 = vsel %vm266, %v267, %v258
        %v269 = vshrl.u32 %v268, 4
        %v270 = vand.u32 %v268, 15
        %v271 = vsub.s32 0, %v270
        %v272 = vsel %vm266, %v271, %v270
        %vm273 = vcmp.ne.s32.totalorder %v265, 0
        %vm274 = vcmp.ne.s32.totalorder %v272, 0
        %vm275 = vcmp.lt.s32.totalorder %v265, 0
        %vm276 = vcmp.lt.s32.totalorder %v272, 0
        %vm277 = vmand %vm275, %vm273
        %vm278 = vmand %vm276, %vm274
        %v279 = vadd.s32 %v265, 16
        %v280 = vadd.s32 %v272, 16
        %v281 = vsel %vm277, %v279, %v265
        %v282 = vsel %vm278, %v280, %v272
        %vm283 = vcmp.ge.s32.totalorder %v281, 1
        %vm284 = vcmp.ge.s32.totalorder %v282, 1
        %vm285 = vcmp.le.s32.totalorder %v281, 14
        %vm286 = vcmp.le.s32.totalorder %v282, 14
        %v287 = vsel %vm283, 1, 0
        %v288 = vsel %vm284, 1, 0
        %vm289 = vcmp.eq.s32.totalorder %v287, 1
        %vm290 = vcmp.eq.s32.totalorder %v288, 1
        %v291 = vsel %vm289, %v254, 0.0
        %v292 = vsel %vm290, %v250, 0.0
        %v293 = vsel %vm285, 1, 0
        %v294 = vsel %vm286, 1, 0
        %vm295 = vcmp.eq.s32.totalorder %v293, 1
        %vm296 = vcmp.eq.s32.totalorder %v294, 1
        %299 = vrot.lane.b32.xlu0 %v254, 126
        %v300 = vpop.permute.xlu0 %299
        %301 = vrot.lane.b32.xlu0 %v250, 126
        %v302 = vpop.permute.xlu0 %301
        %303 = vrot.lane.b32.xlu0 %v255, 126
        %v304 = vpop.permute.xlu0 %303
        %vm305 = vcmask 1031168
        %v306 = vsel %vm305, %v300, %v302
        %v307 = vsel %vm305, %v302, %v304
        %v310 = vsel %vm295, %v306, 0.0
        %v311 = vsel %vm296, %v307, 0.0
        %312 = vrot.lane.b32.xlu0 %v254, 112
        %v313 = vpop.permute.xlu0 %312
        %314 = vrot.lane.b32.xlu0 %v250, 112
        %v315 = vpop.permute.xlu0 %314
        %316 = vrot.lane.b32.xlu0 %v255, 112
        %v317 = vpop.permute.xlu0 %316
        %vm318 = vcmask 916480
        %v319 = vsel %vm318, %v313, %v315
        %v320 = vsel %vm318, %v315, %v317
        %v323 = vsel %vm289, %v319, 0.0
        %v324 = vsel %vm290, %v320, 0.0
        %325 = vrot.lane.b32.xlu0 %v254, 110
        %v326 = vpop.permute.xlu0 %325
        %327 = vrot.lane.b32.xlu0 %v250, 110
        %v328 = vpop.permute.xlu0 %327
        %329 = vrot.lane.b32.xlu0 %v255, 110
        %v330 = vpop.permute.xlu0 %329
        %vm331 = vcmask 900096
        %v332 = vsel %vm331, %v326, %v328
        %v333 = vsel %vm331, %v328, %v330
        %v336 = vsel %vm295, %v332, 0.0
        %v337 = vsel %vm296, %v333, 0.0
        %338 = vrot.lane.b32.xlu0 %v254, 96
        %v339 = vpop.permute.xlu0 %338
        %340 = vrot.lane.b32.xlu0 %v250, 96
        %v341 = vpop.permute.xlu0 %340
        %342 = vrot.lane.b32.xlu0 %v255, 96
        %v343 = vpop.permute.xlu0 %342
        %vm344 = vcmask 785408
        %v345 = vsel %vm344, %v339, %v341
        %v346 = vsel %vm344, %v341, %v343
        %v349 = vsel %vm289, %v345, 0.0
        %v350 = vsel %vm290, %v346, 0.0
        %351 = vrot.lane.b32.xlu0 %v254, 94
        %v352 = vpop.permute.xlu0 %351
        %353 = vrot.lane.b32.xlu0 %v250, 94
        %v354 = vpop.permute.xlu0 %353
        %355 = vrot.lane.b32.xlu0 %v255, 94
        %v356 = vpop.permute.xlu0 %355
        %vm357 = vcmask 769024
        %v358 = vsel %vm357, %v352, %v354
        %v359 = vsel %vm357, %v354, %v356
        %v362 = vsel %vm295, %v358, 0.0
        %v363 = vsel %vm296, %v359, 0.0
        %v364 = vrot.slane %v254, 4
        %v365 = vrot.slane %v250, 4
        %v366 = vrot.slane %v255, 4
        %367 = vrot.lane.b32.xlu0 %v364, 127
        %v368 = vpop.permute.xlu0 %367
        %369 = vrot.lane.b32.xlu0 %v365, 127
        %v370 = vpop.permute.xlu0 %369
        %371 = vrot.lane.b32.xlu0 %v366, 127
        %v372 = vpop.permute.xlu0 %371
        %vm373 = vcmask 1039360
        %v374 = vsel %vm373, %v368, %v370
        %v375 = vsel %vm373, %v370, %v372
        %v380 = vrot.slane %v323, 4
        %v381 = vrot.slane %v324, 4
        %384 = vrot.lane.b32.xlu0 %v254, 111
        %v385 = vpop.permute.xlu0 %384
        %386 = vrot.lane.b32.xlu0 %v250, 111
        %v387 = vpop.permute.xlu0 %386
        %388 = vrot.lane.b32.xlu0 %v255, 111
        %v389 = vpop.permute.xlu0 %388
        %vm390 = vcmask 908288
        %v391 = vsel %vm390, %v385, %v387
        %v392 = vsel %vm390, %v387, %v389
        %v397 = vrot.slane %v336, 4
        %v398 = vrot.slane %v337, 4
        %401 = vrot.lane.b32.xlu0 %v364, 95
        %v402 = vpop.permute.xlu0 %401
        %403 = vrot.lane.b32.xlu0 %v365, 95
        %v404 = vpop.permute.xlu0 %403
        %405 = vrot.lane.b32.xlu0 %v366, 95
        %v406 = vpop.permute.xlu0 %405
        %vm407 = vcmask 777216
        %v408 = vsel %vm407, %v402, %v404
        %v409 = vsel %vm407, %v404, %v406
        %vm412 = vcmask 1043456
        %v413 = vsel %vm412, %v291, %v374
        %v414 = vsel %vm412, %v292, %v375
        %v415 = vsel %vm412, %v310, %v380
        %v416 = vsel %vm412, %v311, %v381
        %v417 = vsel %vm412, %v391, %v397
        %v418 = vsel %vm412, %v392, %v398
        %v419 = vsel %vm412, %v349, %v408
        %v420 = vsel %vm412, %v350, %v409
        %v421 = vld [vmem:[%s1] sm:$0xff]
        %v422 = vld [vmem:[%s2] sm:$0xff]
        %424 = vset.pattern.permute.xlu0 0
        %425 = vperm.xlu0 %424, %v422
        %v426 = vpop.permute.xlu0 %425
        %vm428 = vcmask 293888
        %v430 = vsel %vm428, %v421, 0
        %v433 = vsel %vm412, %v362, 0
        %v436 = vsel %vm412, %v363, 0
        %438 = vmatprep.subr.mxu0 %v414
        %439 = vmatpush1.msra.mxu0 %v413
        %440 = vmatprep.subr.mxu0 %v416
        %441 = vmatpush1.msra.mxu0 %v415
        %442 = vmatprep.subr.mxu0 %v418
        %443 = vmatpush1.msra.mxu0 %v417
        %444 = vmatprep.subr.mxu0 %v420
        %445 = vmatpush1.msra.mxu0 %v419
        %446 = vmatprep.subr.mxu0 %v436
        %447 = vmatpush1.msra.mxu0 %v433
        %448 = vmatprep.subr.mxu0 0.0
        %449 = vmatpush1.msra.mxu0 0.0
        %450 = vmatprep.subr.mxu0 0.0
        %451 = vmatpush1.msra.mxu0 0.0
        %452 = vmatprep.subr.mxu0 0.0
        %453 = vmatpush1.msra.mxu0 0.0
        %454 = vmatprep.subr.mxu0 0.0
        %455 = vmatpush1.msra.mxu0 0.0
        %456 = vmatprep.subr.mxu0 0.0
        %457 = vmatpush1.msra.mxu0 0.0
        %458 = vmatprep.subr.mxu0 0.0
        %459 = vmatpush1.msra.mxu0 0.0
        %460 = vmatprep.subr.mxu0 0.0
        %461 = vmatpush1.msra.mxu0 0.0
        %462 = vmatprep.subr.mxu0 0.0
        %463 = vmatpush1.msra.mxu0 0.0
        %464 = vmatprep.subr.mxu0 0.0
        %465 = vmatpush1.msra.mxu0 0.0
        %466 = vmatprep.subr.mxu0 0.0
        %467 = vmatpush1.msra.mxu0 0.0
        %468 = vmatprep.subr.mxu0 0.0
        %469 = vmatpush1.msra.mxu0 0.0
        %470 = vmatprep.subr.mxu0 0.0
        %471 = vmatpush1.msra.mxu0 0.0
        %472 = vmatprep.subr.mxu0 0.0
        %473 = vmatpush1.msra.mxu0 0.0
        %474 = vmatprep.subr.mxu0 0.0
        %475 = vmatpush1.msra.mxu0 0.0
        %476 = vmatprep.subr.mxu0 0.0
        %477 = vmatpush1.msra.mxu0 0.0
        %478 = vmatprep.subr.mxu0 0.0
        %479 = vmatpush1.msra.mxu0 0.0
        %480 = vmatprep.subr.mxu0 0.0
        %481 = vmatpush1.msra.mxu0 0.0
        %482 = vmatprep.subr.mxu0 0.0
        %483 = vmatpush1.msra.mxu0 0.0
        %484 = vmatprep.subr.mxu0 0.0
        %485 = vmatpush1.msra.mxu0 0.0
        %486 = vmatprep.subr.mxu0 0.0
        %487 = vmatpush1.msra.mxu0 0.0
        %488 = vmatprep.subr.mxu0 0.0
        %489 = vmatpush1.msra.mxu0 0.0
        %490 = vmatprep.subr.mxu0 0.0
        %491 = vmatpush1.msra.mxu0 0.0
        %492 = vmatprep.subr.mxu0 0.0
        %493 = vmatpush1.msra.mxu0 0.0
        %494 = vmatprep.subr.mxu0 0.0
        %495 = vmatpush1.msra.mxu0 0.0
        %496 = vmatprep.subr.mxu0 0.0
        %497 = vmatpush1.msra.mxu0 0.0
        %498 = vmatprep.subr.mxu0 0.0
        %499 = vmatpush1.msra.mxu0 0.0
        %500 = vmatprep.subr.mxu0 0.0
        %501 = vmatpush1.msra.mxu0 0.0
        %502 = vmatprep.mubr.f32.mxu0 0.0
        %503 = vmatmul.mubr.f32.gmra.mrb[0].mxu0 %v430
        %v504 = vpop.f32.mrb[0].mxu0
        %v505 = vadd.f32 %v426, %v504
        %v506 = vpop.f32.mrb[0].mxu0
        %v507 = vadd.f32 %v426, %v506
        %508 = vdwg.mxu0
        %v509 = vmax.f32 %v505, 0.0
        %v510 = vmax.f32 %v507, 0.0
        %v511 = vld [vmem:[%s3] sm:$0xf]
        %v512 = vld [vmem:[%s4] sm:$0xf]
        %514 = vset.pattern.permute.xlu0 0
        %515 = vperm.xlu0 %514, %v512
        %v516 = vpop.permute.xlu0 %515
        %vm518 = vcmask 64512
        %v520 = vsel %vm518, %v511, 0
        %522 = vmatprep.subr.mxu0 %v510
        %523 = vmatpush1.msra.mxu0 %v509
        %524 = vmatprep.subr.mxu0 0.0
        %525 = vmatpush1.msra.mxu0 0.0
        %526 = vmatprep.subr.mxu0 0.0
        %527 = vmatpush1.msra.mxu0 0.0
        %528 = vmatprep.subr.mxu0 0.0
        %529 = vmatpush1.msra.mxu0 0.0
        %530 = vmatprep.subr.mxu0 0.0
        %531 = vmatpush1.msra.mxu0 0.0
        %532 = vmatprep.subr.mxu0 0.0
        %533 = vmatpush1.msra.mxu0 0.0
        %534 = vmatprep.subr.mxu0 0.0
        %535 = vmatpush1.msra.mxu0 0.0
        %536 = vmatprep.subr.mxu0 0.0
        %537 = vmatpush1.msra.mxu0 0.0
        %538 = vmatprep.subr.mxu0 0.0
        %539 = vmatpush1.msra.mxu0 0.0
        %540 = vmatprep.subr.mxu0 0.0
        %541 = vmatpush1.msra.mxu0 0.0
        %542 = vmatprep.subr.mxu0 0.0
        %543 = vmatpush1.msra.mxu0 0.0
        %544 = vmatprep.subr.mxu0 0.0
        %545 = vmatpush1.msra.mxu0 0.0
        %546 = vmatprep.subr.mxu0 0.0
        %547 = vmatpush1.msra.mxu0 0.0
        %548 = vmatprep.subr.mxu0 0.0
        %549 = vmatpush1.msra.mxu0 0.0
        %550 = vmatprep.subr.mxu0 0.0
        %551 = vmatpush1.msra.mxu0 0.0
        %552 = vmatprep.subr.mxu0 0.0
        %553 = vmatpush1.msra.mxu0 0.0
        %554 = vmatprep.subr.mxu0 0.0
        %555 = vmatpush1.msra.mxu0 0.0
        %556 = vmatprep.subr.mxu0 0.0
        %557 = vmatpush1.msra.mxu0 0.0
        %558 = vmatprep.subr.mxu0 0.0
        %559 = vmatpush1.msra.mxu0 0.0
        %560 = vmatprep.subr.mxu0 0.0
        %561 = vmatpush1.msra.mxu0 0.0
        %562 = vmatprep.subr.mxu0 0.0
        %563 = vmatpush1.msra.mxu0 0.0
        %564 = vmatprep.subr.mxu0 0.0
        %565 = vmatpush1.msra.mxu0 0.0
        %566 = vmatprep.subr.mxu0 0.0
        %567 = vmatpush1.msra.mxu0 0.0
        %568 = vmatprep.subr.mxu0 0.0
        %569 = vmatpush1.msra.mxu0 0.0
        %570 = vmatprep.subr.mxu0 0.0
        %571 = vmatpush1.msra.mxu0 0.0
        %572 = vmatprep.subr.mxu0 0.0
        %573 = vmatpush1.msra.mxu0 0.0
        %574 = vmatprep.subr.mxu0 0.0
        %575 = vmatpush1.msra.mxu0 0.0
        %576 = vmatprep.subr.mxu0 0.0
        %577 = vmatpush1.msra.mxu0 0.0
        %578 = vmatprep.subr.mxu0 0.0
        %579 = vmatpush1.msra.mxu0 0.0
        %580 = vmatprep.subr.mxu0 0.0
        %581 = vmatpush1.msra.mxu0 0.0
        %582 = vmatprep.subr.mxu0 0.0
        %583 = vmatpush1.msra.mxu0 0.0
        %584 = vmatprep.subr.mxu0 0.0
        %585 = vmatpush1.msra.mxu0 0.0
        %586 = vmatprep.mubr.f32.mxu0 0.0
        %587 = vmatmul.mubr.f32.gmra.mrb[0].mxu0 %v520
        %v588 = vpop.f32.mrb[0].mxu0
        %v589 = vadd.f32 %v516, %v588
        %v590 = vpop.f32.mrb[0].mxu0
        %v591 = vadd.f32 %v516, %v590
        %592 = vdwg.mxu0
        %v594 = vcombine.high %v241, %v241
        %v596 = vadd.f32 %v589, %v241
        %v597 = vadd.f32 %v591, %v594
        %v600 = vcombine.low %v596, %v597
        %602 = vst [vmem:[%s240] sm:$0xff] %v600
        %s603 = sand.u32 %s140, 1
        %s604 = scalar_lea.sflag [#allocation4], %s603
        %s605 = sand.u32 %s140, 1
        %s606 = smul.addr %s605, 8
        %s607 = scalar_lea.vmem [#allocation5], %s606
        // Predicated region
        $region45: #{tpu_custom_call.1} parent=39 // pred_check
          %p608 = pneg %p150
        $region46: #{tpu_custom_call.1} parent=39 // pred_check_branch
          %610 = sbr.rel (%p608) target = $region48
        $region47: #{tpu_custom_call.1} parent=39 // pred_region
          %s612 = ssub.s32 128, 128
          %613 = vsyncadd %s604, %s612
          %s614 = smul.addr %s22, 2
          %s615 = smul.addr %s614, 64
          %s616 = scalar_lea.hbm %s5, %s615
          %s618 = sshll.u32 %s607, 4
          %s619 = int_to_ptr.vmem [resolvable:$true] %s618
          %621 = dma.vmem_to_hbm [thread:$0]  %s619, 128, %s616, %s604
        $region48: #{tpu_custom_call.1} parent=39 // pred_fallthru
          _
      $region40: #{tpu_custom_call.1} parent=5 // pred_fallthru
        _
      %p622 = scmp.le.s32.totalorder 2, %s17
      // Predicated region
      $region49: #{tpu_custom_call.1} parent=5 // pred_check
        %p623 = pneg %p622
      $region50: #{tpu_custom_call.1} parent=5 // pred_check_branch
        %625 = sbr.rel (%p623) target = $region52
      $region51: #{tpu_custom_call.1} parent=5 // pred_region
        %s626 = ssub.s32 %s17, 2
        // Predicated region
        $region53: #{tpu_custom_call.1} parent=51 // pred_check
          %p627 = pneg %p156
        $region54: #{tpu_custom_call.1} parent=51 // pred_check_branch
          %629 = sbr.rel (%p627) target = $region56
        $region55: #{tpu_custom_call.1} parent=51 // pred_region
          %s630 = sand.u32 %s141, 1
          %s631 = scalar_lea.sflag [#allocation4], %s630
          %s632 = sand.u32 %s141, 1
          %s633 = smul.addr %s632, 8
          %s634 = scalar_lea.vmem [#allocation5], %s633
          %635 = dma.done %s631, 128
        $region56: #{tpu_custom_call.1} parent=51 // pred_fallthru
          _
      $region52: #{tpu_custom_call.1} parent=5 // pred_fallthru
        _
    $region6: #{tpu_custom_call.1} parent=1 // loop_footer
      %s21 = sadd.s32 1, %s17
    $region7: #{tpu_custom_call.1} parent=1 // loop_footer_branch
      %16 = sbr.rel target = $region3
    $region8: #{tpu_custom_call.1} parent=1 // loop_exit
      _
    %636 = vsyncpa [#allocation3], 1
    %s637 = scalar_lea.sflag [#allocation3], 1
    %638 = vsyncpa %s637, 1
    %639 = vsyncpa [#allocation4], 1
    %s640 = scalar_lea.sflag [#allocation4], 1
    %641 = vsyncpa %s640, 1

</llo_original>
